<compile_context>
chip_gen: v5e
topology: v5e:2x2
jax: 0.10.0
libtpu: 0.0.40
codegen_flags: <defaults>
</compile_context>

<pallas_src>
import jax
import jax.numpy as jnp
from jax.experimental import pallas as pl
from jax.experimental.pallas import tpu as pltpu


def _make_particul_kernel(bn, hw_true, hw_pad):
    """Build the kernel for a given per-step batch size and HW padding."""
    needs_mask = hw_pad != hw_true

    def kernel(x_ref, w_ref, calib_ref, amap_ref, conf_ref):
        # x_ref     : (Bn, D, HW_pad)   features (compute dtype, HW on lanes)
        # w_ref     : (CPb, D)          fused 1x1 conv weights (compute dtype)
        # calib_ref : (CPb, 2)          [:, 0] = mu, [:, 1] = 1/sigma (f32)
        # amap_ref  : (Bn, CPb, HW_pad) activation maps (softmax over HW)
        # conf_ref  : (Bn, CPb, 1)      confidences (f32)
        w = w_ref[...]                                    # hoisted, loop-invariant
        calib = calib_ref[...].astype(jnp.float32)
        mu = calib[:, 0:1]                                # (CPb, 1)
        inv_sigma = calib[:, 1:2]                         # (CPb, 1)
        if needs_mask:
            lane = jax.lax.broadcasted_iota(
                jnp.int32, (w_ref.shape[0], hw_pad), 1)
            pad_mask = lane >= hw_true                    # padded HW columns

        @pl.loop(0, bn)
        def _(b):
            # 1x1 conv over all classes/patterns == one MXU matmul, f32 accum.
            z = jnp.dot(w, x_ref[b],
                        preferred_element_type=jnp.float32)   # (CPb, HW_pad)
            if needs_mask:
                z = jnp.where(pad_mask, -1e30, z)

            # Spatial softmax over HW (lane axis) -> activation maps.
            zmax = jnp.max(z, axis=-1, keepdims=True)          # (CPb, 1)
            e = jnp.exp(z - zmax)                              # (CPb, HW_pad)
            s = jnp.sum(e, axis=-1, keepdims=True)             # (CPb, 1)
            amap_ref[b] = (e * pl.reciprocal(s, approx=True)).astype(amap_ref.dtype)

            # Calibrated logistic confidence on the max correlation score.
            conf_ref[b] = jax.nn.sigmoid((zmax - mu) * inv_sigma).astype(conf_ref.dtype)

    return kernel


def particul_od2_forward(x_nchw, weight_cpd, mu_cp, sigma_cp,
                         compute_dtype=jnp.bfloat16, out_dtype=jnp.bfloat16):
    """ParticulOD2 forward.

    x_nchw: (N, D, H, W); weight_cpd: (C, P, D); mu/sigma: (C, P).
    Returns (amaps: (N, C, P, H, W) in out_dtype, conf: (N, C, P) in f32).

    `compute_dtype` is the dtype fed to the MXU (both x and w are cast to it;
    accumulation stays f32). `out_dtype` controls the activation-map dtype.
    Note: with approx reciprocal + bf16 output, softmax rows sum to 1 only to
    ~1e-3 relative accuracy; pass f32 dtypes if exact normalization matters.
    """
    N, D, H, W = x_nchw.shape
    C, P, Dw = weight_cpd.shape
    assert D == Dw
    HW = H * W
    CP = C * P
    compute_dtype = jnp.dtype(compute_dtype)
    out_dtype = jnp.dtype(out_dtype)

    # --- Generation-aware VMEM budget -------------------------------------
    try:
        vmem_cap = int(pltpu.get_tpu_info().vmem_capacity_bytes)
    except Exception:
        vmem_cap = 64 * 1024 * 1024  # conservative (v7x-sized) fallback
    # Leave headroom for Mosaic internal scratch / semaphores / metadata.
    vmem_limit = max(vmem_cap - (8 << 20), 32 << 20)

    # --- Host-side layout glue: pure reshapes / pads only ------------------
    hw_pad = HW if HW % 128 == 0 else (-(-HW // 128)) * 128  # lane-dense HW
    x_k = x_nchw.reshape(N, D, HW).astype(compute_dtype)     # (N, D, HW)
    if hw_pad != HW:
        x_k = jnp.pad(x_k, ((0, 0), (0, 0), (0, hw_pad - HW)))
    w_k = weight_cpd.reshape(CP, D).astype(compute_dtype)     # (CP, D), same dtype as x
    sigma_safe = jnp.maximum(sigma_cp.astype(jnp.float32),
                             jnp.finfo(jnp.float32).tiny)     # avoid inf/NaN in 1/sigma
    calib = jnp.stack(
        [mu_cp.reshape(CP).astype(jnp.float32),
         (1.0 / sigma_safe).reshape(CP)], axis=-1)            # (CP, 2)

    # --- Choose samples-per-step Bn from the VMEM budget --------------------
    x_per = D * hw_pad * compute_dtype.itemsize
    amap_per = CP * hw_pad * out_dtype.itemsize
    conf_per = CP * 4
    per_sample = x_per + amap_per + conf_per
    fixed = CP * D * compute_dtype.itemsize + CP * 2 * 4      # weights + calib (resident)
    temps = 2 * CP * hw_pad * 4                               # f32 z and e live per step
    budget = vmem_limit - fixed - temps - (2 << 20)           # extra margin
    bn_fit = max(1, budget // (2 * per_sample))               # double-buffered blocks
    bn_amortize = max(1, (6 << 20) // per_sample)             # ~2-8 MB per buffer target
    bn = int(max(1, min(N, bn_fit, bn_amortize)))
    # TODO(synk): if even bn=1 exceeds the budget (huge D*HW), a D-split
    # reduction axis / HW-split online softmax fallback is required.

    nb = -(-N // bn)
    n_pad = nb * bn
    if n_pad != N:
        x_k = jnp.pad(x_k, ((0, n_pad - N), (0, 0), (0, 0)))

    # Split C*P over a second parallel axis when there is only one batch
    # block, so both v7x TensorCores get work (only when the split keeps the
    # CP block a multiple of 8, per the (8,128) block constraint).
    cp_blocks = 2 if (nb == 1 and CP % 16 == 0) else 1
    cp_blk = CP // cp_blocks

    kernel = _make_particul_kernel(bn, HW, hw_pad)

    amap, conf = pl.pallas_call(
        kernel,
        grid=(nb, cp_blocks),
        in_specs=[
            pl.BlockSpec((bn, D, hw_pad), lambda n, j: (n, 0, 0)),  # x slab
            pl.BlockSpec((cp_blk, D), lambda n, j: (j, 0)),         # weights
            pl.BlockSpec((cp_blk, 2), lambda n, j: (j, 0)),         # mu / 1/sigma
        ],
        out_specs=[
            pl.BlockSpec((bn, cp_blk, hw_pad), lambda n, j: (n, j, 0)),  # lane-dense amaps
            pl.BlockSpec((bn, cp_blk, 1), lambda n, j: (n, j, 0)),       # confidences
        ],
        out_shape=[
            jax.ShapeDtypeStruct((n_pad, CP, hw_pad), out_dtype),
            jax.ShapeDtypeStruct((n_pad, CP, 1), jnp.float32),
        ],
        compiler_params=pltpu.CompilerParams(
            dimension_semantics=("parallel", "parallel"),
            vmem_limit_bytes=int(vmem_limit),
        ),
    )(x_k, w_k, calib)

    # Slice off batch / HW padding, then pure reshapes back to PyTorch layout.
    amaps = amap[:N, :, :HW].reshape(N, C, P, H, W)
    conf = conf[:N].reshape(N, C, P)
    return amaps, conf


def _reference_forward(x_nchw, weight_cpd, mu_cp, sigma_cp):
    """Pure-JAX reference mirroring the PyTorch forward."""
    N, D, H, W = x_nchw.shape
    C, P, _ = weight_cpd.shape
    z = jnp.einsum("ndhw,cpd->ncphw", x_nchw, weight_cpd)
    zf = z.reshape(N, C, P, H * W)
    amaps = jax.nn.softmax(zf, axis=-1).reshape(N, C, P, H, W)
    vmax = jnp.max(zf, axis=-1)
    conf = jax.nn.sigmoid((vmax - mu_cp[None]) / sigma_cp[None])
    return amaps, conf


if __name__ == "__main__":
    # Small synthetic configuration: nclasses=3, npatterns=2, nchans=32, 16x16 maps.
    N, C, P, D, H, W = 2, 3, 2, 32, 16, 16

    key = jax.random.PRNGKey(0)
    kx, kw, km = jax.random.split(key, 3)

    x = jax.random.normal(kx, (N, D, H, W), dtype=jnp.float32)
    # Deterministic "Conv2d(D, P, kernel_size=1, bias=False)" weights per class.
    weight = jax.random.normal(kw, (C, P, D), dtype=jnp.float32) / jnp.sqrt(D)
    # Deterministic calibration parameters (normalization enabled).
    mu = 0.1 * jax.random.normal(km, (C, P), dtype=jnp.float32)
    sigma = jnp.ones((C, P), dtype=jnp.float32)

    amaps, conf = particul_od2_forward(x, weight, mu, sigma)  # bf16 compute/output path
    jax.block_until_ready((amaps, conf))
    assert amaps.shape == (N, C, P, H, W) and conf.shape == (N, C, P)

    # Reference on the same bf16-rounded inputs (the kernel's MXU consumes bf16
    # with f32 accumulation), so the comparison isolates kernel error.
    xq = x.astype(jnp.bfloat16).astype(jnp.float32)
    wq = weight.astype(jnp.bfloat16).astype(jnp.float32)
    amaps_ref, conf_ref = _reference_forward(xq, wq, mu, sigma)

    # bf16 output + EUP approximate reciprocal -> ~1e-2 absolute tolerance.
    assert jnp.allclose(amaps.astype(jnp.float32), amaps_ref, atol=2e-2, rtol=2e-2)
    assert jnp.allclose(conf, conf_ref, atol=1e-3, rtol=1e-3)

    print("KERNEL_OK")
</pallas_src>

<mosaic_0001>
module attributes {stable_mosaic.version = 11 : i64} {
  func.func @kernel(%arg0: i32, %arg1: i32, %arg2: memref<2x32x256xbf16, #tpu.memory_space<vmem>>, %arg3: memref<6x32xbf16, #tpu.memory_space<vmem>>, %arg4: memref<6x2xf32, #tpu.memory_space<vmem>>, %arg5: memref<2x6x256xbf16, #tpu.memory_space<vmem>>, %arg6: memref<2x6x1xf32, #tpu.memory_space<vmem>>) attributes {dimension_semantics = [#tpu.dimension_semantics<parallel>, #tpu.dimension_semantics<parallel>], iteration_bounds = array<i64: 1, 1>, scalar_prefetch = 0 : i64, scratch_operands = 0 : i64, tpu.core_type = #tpu.core_type<tc>, window_params = [{transform_indices = @transform_0, window_bounds = array<i64: 2, 32, 256>}, {transform_indices = @transform_1, window_bounds = array<i64: 6, 32>}, {transform_indices = @transform_2, window_bounds = array<i64: 6, 2>}, {transform_indices = @transform_3, window_bounds = array<i64: 2, 6, 256>}, {transform_indices = @transform_4, window_bounds = array<i64: 2, 6, 1>}]} {
    %c0 = arith.constant 0 : index
    %c0_0 = arith.constant 0 : index
    %0 = vector.load %arg3[%c0, %c0_0] : memref<6x32xbf16, #tpu.memory_space<vmem>>, vector<6x32xbf16>
    %c0_1 = arith.constant 0 : index
    %c0_2 = arith.constant 0 : index
    %1 = vector.load %arg4[%c0_1, %c0_2] : memref<6x2xf32, #tpu.memory_space<vmem>>, vector<6x2xf32>
    %2 = vector.extract_strided_slice %1 {offsets = [0, 0], sizes = [6, 1], strides = [1, 1]} : vector<6x2xf32> to vector<6x1xf32>
    %3 = vector.extract_strided_slice %1 {offsets = [0, 1], sizes = [6, 1], strides = [1, 1]} : vector<6x2xf32> to vector<6x1xf32>
    %c0_i32 = arith.constant 0 : i32
    %c2_i32 = arith.constant 2 : i32
    %4 = arith.addi %c0_i32, %c2_i32 : i32
    %c1_i32 = arith.constant 1 : i32
    scf.for %arg7 = %c0_i32 to %4 step %c1_i32  : i32 {
      %c1_i32_4 = arith.constant 1 : i32
      %5 = arith.muli %arg7, %c1_i32_4 : i32
      %c0_i32_5 = arith.constant 0 : i32
      %6 = arith.addi %c0_i32_5, %5 : i32
      %7 = arith.index_cast %6 : i32 to index
      %c0_6 = arith.constant 0 : index
      %c0_7 = arith.constant 0 : index
      %8 = vector.load %arg2[%7, %c0_6, %c0_7] : memref<2x32x256xbf16, #tpu.memory_space<vmem>>, vector<1x32x256xbf16>
      %9 = vector.shape_cast %8 : vector<1x32x256xbf16> to vector<32x256xbf16>
      %cst = arith.constant dense<0.000000e+00> : vector<6x256xf32>
      %10 = tpu.matmul %0, %9, %cst {dimension_numbers = #tpu.dot_dimension_numbers<[1], [0], [0], [1], [0, 0, 1, 1], [], []>} : vector<6x32xbf16>, vector<32x256xbf16>, vector<6x256xf32> -> vector<6x256xf32>
      %cst_8 = arith.constant dense<0xFF800000> : vector<6xf32>
      %11 = vector.multi_reduction <maximumf>, %10, %cst_8 [1] : vector<6x256xf32> to vector<6xf32>
      %12 = vector.shape_cast %11 : vector<6xf32> to vector<6x1xf32>
      %13 = vector.broadcast %12 : vector<6x1xf32> to vector<6x256xf32>
      %14 = arith.subf %10, %13 : vector<6x256xf32>
      %15 = math.exp %14 : vector<6x256xf32>
      %cst_9 = arith.constant dense<0.000000e+00> : vector<6xf32>
      %16 = vector.multi_reduction <add>, %15, %cst_9 [1] : vector<6x256xf32> to vector<6xf32>
      %17 = vector.shape_cast %16 : vector<6xf32> to vector<6x1xf32>
      %18 = tpu.reciprocal %17 {approx = true} : vector<6x1xf32> -> vector<6x1xf32>
      %19 = vector.broadcast %18 : vector<6x1xf32> to vector<6x256xf32>
      %20 = arith.mulf %15, %19 : vector<6x256xf32>
      %21 = arith.truncf %20 : vector<6x256xf32> to vector<6x256xbf16>
      %22 = arith.index_cast %6 : i32 to index
      %c0_10 = arith.constant 0 : index
      %c0_11 = arith.constant 0 : index
      %23 = vector.load %arg5[%22, %c0_10, %c0_11] : memref<2x6x256xbf16, #tpu.memory_space<vmem>>, vector<1x6x256xbf16>
      %24 = vector.shape_cast %23 : vector<1x6x256xbf16> to vector<6x256xbf16>
      %25 = vector.shape_cast %21 : vector<6x256xbf16> to vector<1x6x256xbf16>
      tpu.vector_store %arg5[%22, %c0_10, %c0_11], %25 {strides = array<i32>} : memref<2x6x256xbf16, #tpu.memory_space<vmem>>, vector<1x6x256xbf16>,
      %26 = arith.subf %12, %2 : vector<6x1xf32>
      %27 = arith.mulf %26, %3 : vector<6x1xf32>
      %28 = arith.negf %27 : vector<6x1xf32>
      %29 = math.exp %28 : vector<6x1xf32>
      %cst_12 = arith.constant 1.000000e+00 : f32
      %30 = vector.broadcast %cst_12 : f32 to vector<6x1xf32>
      %31 = arith.addf %30, %29 : vector<6x1xf32>
      %32 = arith.divf %30, %31 : vector<6x1xf32>
      %33 = arith.index_cast %6 : i32 to index
      %c0_13 = arith.constant 0 : index
      %c0_14 = arith.constant 0 : index
      %34 = vector.load %arg6[%33, %c0_13, %c0_14] : memref<2x6x1xf32, #tpu.memory_space<vmem>>, vector<1x6x1xf32>
      %35 = vector.shape_cast %34 : vector<1x6x1xf32> to vector<6x1xf32>
      %36 = vector.shape_cast %32 : vector<6x1xf32> to vector<1x6x1xf32>
      tpu.vector_store %arg6[%33, %c0_13, %c0_14], %36 {strides = array<i32>} : memref<2x6x1xf32, #tpu.memory_space<vmem>>, vector<1x6x1xf32>,
    }
    %c2_i32_3 = arith.constant 2 : i32
    return
  }
  func.func @transform_0(%arg0: i32, %arg1: i32) -> (i32, i32, i32) {
    %c0_i32 = arith.constant 0 : i32
    %c0_i32_0 = arith.constant 0 : i32
    %c0_i32_1 = arith.constant 0 : i32
    return %arg0, %c0_i32, %c0_i32_0 : i32, i32, i32
  }
  func.func @transform_1(%arg0: i32, %arg1: i32) -> (i32, i32) {
    %c0_i32 = arith.constant 0 : i32
    %c0_i32_0 = arith.constant 0 : i32
    return %arg1, %c0_i32 : i32, i32
  }
  func.func @transform_2(%arg0: i32, %arg1: i32) -> (i32, i32) {
    %c0_i32 = arith.constant 0 : i32
    %c0_i32_0 = arith.constant 0 : i32
    return %arg1, %c0_i32 : i32, i32
  }
  func.func @transform_3(%arg0: i32, %arg1: i32) -> (i32, i32, i32) {
    %c0_i32 = arith.constant 0 : i32
    %c0_i32_0 = arith.constant 0 : i32
    return %arg0, %arg1, %c0_i32 : i32, i32, i32
  }
  func.func @transform_4(%arg0: i32, %arg1: i32) -> (i32, i32, i32) {
    %c0_i32 = arith.constant 0 : i32
    %c0_i32_0 = arith.constant 0 : i32
    return %arg0, %arg1, %c0_i32 : i32, i32, i32
  }
}

</mosaic_0001>

<llo_original>
// kernel: tpu_custom_call.1
$region0: #{tpu_custom_call.1}
  #allocation0 [shape = 'u32[]', space=smem, size = 0x4, offset = 0x4, fixed_abs, tag = 'smem constant byte address 0x4 - core index']
  #allocation1 [shape = 'u32[72,128]{1,0:T(1,128)}', space=vmem, size = 0x9000, scoped, tag = 'internal scratch']
  %s0 = inlined_call_operand.hbm [shape: bf16[2,32,256], index: 0, kind: input, shape index: {}]
  %s1 = inlined_call_operand.vmem [shape: bf16[6,32], index: 1, kind: input, shape index: {}]
  %s2 = inlined_call_operand.vmem [shape: f32[6,2], index: 2, kind: input, shape index: {}]
  %s3 = inlined_call_operand.vmem [shape: bf16[2,6,256], index: 3, kind: output, shape index: {0}]
  %s4 = inlined_call_operand.vmem [shape: f32[2,6,1], index: 4, kind: output, shape index: {1}]
  %5 = xla_tuple %s3, %s4
  %s6 = sld [smem:[#allocation0]]
  $region41: #{tpu_custom_call.1} parent=0
    _
  %s8 = ssub.s32 1, %s6
  %s9 = scalar_select 0, %s8, %s6
  $region1: #{tpu_custom_call.1} parent=0
    #allocation2 [shape = 'u8[32768]{0}', space=vmem, size = 0x8000, scoped, tag = 'input window, operand 0, single buffered']
    #allocation3 [shape = 's32[1]{0}', space=sflag, size = 0x4, scoped, tag = 'scoped memory for tpu_custom_call.1']
    %10 = vsyncpa [#allocation3], 0
    // Predicated region
    $region2: #{tpu_custom_call.1} parent=1 // pred_check
      _
    $region3: #{tpu_custom_call.1} parent=1 // pred_check_branch
      %12 = sbr.rel (0) target = $region5
    $region4: #{tpu_custom_call.1} parent=1 // pred_region
      %14 = vsyncadd [#allocation3], 0
      %s15 = sshll.u32 %s0, 4
      %s16 = int_to_ptr.hbm [resolvable:$true] %s15
      %s17 = sshll.u32 [#allocation2], 4
      %s18 = int_to_ptr.vmem [resolvable:$true] %s17
      %23 = dma.hbm_to_vmem [thread:$0]  %s16, 1024, %s18, [#allocation3], 128, 128, 8
    $region5: #{tpu_custom_call.1} parent=1 // pred_fallthru
      _
    // Predicated region
    $region6: #{tpu_custom_call.1} parent=1 // pred_check
      _
    $region7: #{tpu_custom_call.1} parent=1 // pred_check_branch
      %25 = sbr.rel (0) target = $region9
    $region8: #{tpu_custom_call.1} parent=1 // pred_region
      _
    $region9: #{tpu_custom_call.1} parent=1 // pred_fallthru
      _
    // Predicated region
    $region10: #{tpu_custom_call.1} parent=1 // pred_check
      _
    $region11: #{tpu_custom_call.1} parent=1 // pred_check_branch
      %27 = sbr.rel (0) target = $region13
    $region12: #{tpu_custom_call.1} parent=1 // pred_region
      _
    $region13: #{tpu_custom_call.1} parent=1 // pred_fallthru
      _
    // Predicated region
    $region14: #{tpu_custom_call.1} parent=1 // pred_check
      _
    $region15: #{tpu_custom_call.1} parent=1 // pred_check_branch
      %29 = sbr.rel (0) target = $region17
    $region16: #{tpu_custom_call.1} parent=1 // pred_region
      %31 = dma.done [#allocation3], 1024
    $region17: #{tpu_custom_call.1} parent=1 // pred_fallthru
      _
    %v33 = vld [vmem:[%s1] sm:$0x7]
    %v34 = vld [vmem:[%s2] sm:$0x3f]
    loop: start=0, step=1, limit=2
    $region18: #{tpu_custom_call.1} parent=1 // loop_pre_header
      _
    $region19: #{tpu_custom_call.1} parent=1 // loop_header
      %s36 = sphi 0, %s40
      %p37 = scmp.ge.s32.totalorder %s36, 2
    $region20: #{tpu_custom_call.1} parent=1 // loop_header_branch
      %39 = sbr.rel (%p37) target = $region24
    $region21: #{tpu_custom_call.1} parent=1 // loop_body
      %s41 = smul.u32 %s36, 8
      %s42 = smul.addr %s41, 4
      %s43 = scalar_lea.vmem [#allocation2], %s42
      %v44 = vld [vmem:[%s43] sm:$0xff]
      %v45 = vld [vmem:[%s43 + $0x8] sm:$0xff]
      %v46 = vld [vmem:[%s43 + $0x10] sm:$0xff]
      %v47 = vld [vmem:[%s43 + $0x18] sm:$0xff]
      %v52 = vunpack.c.l.b16 %v44
      %v53 = vunpack.c.h.b16 %v44
      %v54 = vunpack.c.l.b16 %v45
      %v55 = vunpack.c.h.b16 %v45
      %v56 = vunpack.c.l.b16 %v46
      %v57 = vunpack.c.h.b16 %v46
      %v58 = vunpack.c.l.b16 %v47
      %v59 = vunpack.c.h.b16 %v47
      %v60 = vpack.c.b16 %v54, %v52
      %v61 = vpack.c.b16 %v55, %v53
      %v62 = vpack.c.b16 %v58, %v56
      %v63 = vpack.c.b16 %v59, %v57
      %vm68 = vcmask 261120
      %v70 = vsel %vm68, %v33, 0
      %72 = vmatpush.bf16.msra.mxu0 0
      %73 = vmatpush.bf16.msra.mxu0 0
      %74 = vmatpush.bf16.msra.mxu0 0
      %75 = vmatpush.bf16.msra.mxu0 0
      %76 = vmatpush.bf16.msra.mxu0 0
      %77 = vmatpush.bf16.msra.mxu0 0
      %78 = vmatpush.bf16.msra.mxu0 %v62
      %79 = vmatpush.bf16.msra.mxu0 %v60
      %80 = vmatmul.bf16.gmra.mxu0 %v70
      %v81 = vpop.f32.mrf.mxu0
      %v82 = vadd.f32 0.0, %v81
      %v83 = vpop.f32.mrf.mxu0
      %84 = vdwg.mxu0
      %85 = vmatpush.bf16.msra.mxu0 0
      %86 = vmatpush.bf16.msra.mxu0 0
      %87 = vmatpush.bf16.msra.mxu0 0
      %88 = vmatpush.bf16.msra.mxu0 0
      %89 = vmatpush.bf16.msra.mxu0 0
      %90 = vmatpush.bf16.msra.mxu0 0
      %91 = vmatpush.bf16.msra.mxu0 %v63
      %92 = vmatpush.bf16.msra.mxu0 %v61
      %93 = vmatmul.bf16.gmra.mxu0 %v70
      %v94 = vpop.f32.mrf.mxu0
      %v95 = vadd.f32 0.0, %v94
      %v96 = vpop.f32.mrf.mxu0
      %97 = vdwg.mxu0
      %vm98 = vcmask 1045504
      %v99 = vsel %vm98, %v82, -inf
      %v100 = vsel %vm98, %v95, -inf
      %v101 = vmax.f32 %v99, %v100
      %102 = vmax.xlane.f32.xlu0 %v101
      %v103 = vpop.xlane.xlu0 %102
      %v104 = vsub.f32 %v82, %v103
      %v105 = vsub.f32 %v95, %v103
      %v106 = vmul.f32 %v104, 1.442695
      %v107 = vpow.pop %v106
      %v108 = vmul.f32 %v105, 1.442695
      %v109 = vpow.pop %v108
      %v110 = vsel %vm98, %v107, 0.0
      %v111 = vsel %vm98, %v109, 0.0
      %v112 = vadd.f32 %v110, %v111
      %113 = vadd.xlane.f32.xlu0 %v112
      %v114 = vpop.xlane.xlu0 %113
      %v115 = vrcp.pop %v114
      %v116 = vmul.f32 %v107, %v115
      %v117 = vmul.f32 %v109, %v115
      %v118 = vpack.c.bf16 %v117, %v116
      %s119 = smul.u32 %s36, 2
      %s120 = smul.addr %s119, 4
      %s121 = scalar_lea.vmem %s3, %s120
      %122 = vst [vmem:[%s121] sm:$0x77] %v118
      %v123 = vsub.f32 %v103, %v34
      %125 = vrot.lane.b32.xlu0 %v34, 127
      %v126 = vpop.permute.xlu0 %125
      %v128 = vmul.f32 %v123, %v126
      %v129 = vxor.u32 %v128, 2147483648
      %v130 = vmul.f32 %v129, 1.442695
      %v131 = vpow.pop %v130
      %v132 = vadd.f32 %v131, 1.0
      %v133 = vrcp.pop %v132
      %v134 = vmul.f32 %v132, %v133
      %v135 = vsub.f32 1.0, %v134
      %v136 = vmul.f32 %v133, %v135
      %v137 = vadd.f32 %v133, %v136
      %vm138 = vweird.f32 %v132
      %vm139 = vweird.f32 %v133
      %vm140 = vmor %vm138, %vm139
      %v141 = vsel %vm140, %v133, %v137
      %v142 = vand.u32 2147483647, %v132
      %vm143 = vcmp.eq.f32.partialorder %v142, 8.507059e+37
      %v144 = vand.u32 %v132, 2147483648
      %v145 = vor.u32 1.1754944e-38, %v144
      %v146 = vsel %vm143, %v145, %v141
      %v147 = vmul.f32 1.0, %v146
      %s148 = scalar_lea.vmem %s4, %s41
      %vm149 = vcmask 5120
      %150 = vst.msk [vmem:[%s148] sm:$0x3f] %vm149, %v147
    $region22: #{tpu_custom_call.1} parent=1 // loop_footer
      %s40 = sadd.s32 1, %s36
    $region23: #{tpu_custom_call.1} parent=1 // loop_footer_branch
      %35 = sbr.rel target = $region19
    $region24: #{tpu_custom_call.1} parent=1 // loop_exit
      _
    // Predicated region
    $region25: #{tpu_custom_call.1} parent=1 // pred_check
      _
    $region26: #{tpu_custom_call.1} parent=1 // pred_check_branch
      %152 = sbr.rel (0) target = $region28
    $region27: #{tpu_custom_call.1} parent=1 // pred_region
      _
    $region28: #{tpu_custom_call.1} parent=1 // pred_fallthru
      _
    // Predicated region
    $region29: #{tpu_custom_call.1} parent=1 // pred_check
      _
    $region30: #{tpu_custom_call.1} parent=1 // pred_check_branch
      %154 = sbr.rel (0) target = $region32
    $region31: #{tpu_custom_call.1} parent=1 // pred_region
      _
    $region32: #{tpu_custom_call.1} parent=1 // pred_fallthru
      _
    // Predicated region
    $region33: #{tpu_custom_call.1} parent=1 // pred_check
      _
    $region34: #{tpu_custom_call.1} parent=1 // pred_check_branch
      %156 = sbr.rel (0) target = $region36
    $region35: #{tpu_custom_call.1} parent=1 // pred_region
      _
    $region36: #{tpu_custom_call.1} parent=1 // pred_fallthru
      _
    // Predicated region
    $region37: #{tpu_custom_call.1} parent=1 // pred_check
      _
    $region38: #{tpu_custom_call.1} parent=1 // pred_check_branch
      %158 = sbr.rel (0) target = $region40
    $region39: #{tpu_custom_call.1} parent=1 // pred_region
      _
    $region40: #{tpu_custom_call.1} parent=1 // pred_fallthru
      _
    %159 = vsyncpa [#allocation3], 1

</llo_original>
